<compile_context>
chip_gen: v7x
topology: tpu7x:2x2x1
jax: 0.10.0
libtpu: 0.0.40
codegen_flags: <defaults>
</compile_context>

<pallas_src>
import functools

import jax
import jax.numpy as jnp
from jax.experimental import pallas as pl
from jax.experimental.pallas import tpu as pltpu


# ----------------------------------------------------------------------------
# Kernels
# ----------------------------------------------------------------------------
def _fma_relu_store(taps, w, o_ref):
    """taps: list of K (b_tile, l_tile) f32 arrays; w: (F, K) f32; o: (b, F, l)."""
    acc = w[None, :, 0, None] * taps[0][:, None, :]            # (b, F, l)
    for k in range(1, len(taps)):
        acc = acc + w[None, :, k, None] * taps[k][:, None, :]
    o_ref[...] = jnp.maximum(acc, 0.0).astype(o_ref.dtype)


def _encoder_kernel_stride1(x_cur_ref, x_halo_ref, w_ref, o_ref, *, k_size):
    """stride == 1 (kernel_dim 2 or 3).

    x_cur_ref  : (b_tile, l_tile)  input window for this L tile (tap 0)
    x_halo_ref : (b_tile, 128)     the next 128 input samples (halo: K-1 used)
    w_ref      : (F, K)            Conv1d weight (features on sublanes)
    o_ref      : (b_tile, F, l_tile) output tile, NCL layout, L on lanes
    """
    b_tile, l_tile = x_cur_ref.shape
    w = w_ref[...].astype(jnp.float32)
    x0 = x_cur_ref[...].astype(jnp.float32)                    # zero-copy aligned view
    taps = [x0]
    if k_size > 1:
        halo = x_halo_ref[...].astype(jnp.float32)
        lane = jax.lax.broadcasted_iota(jnp.int32, (b_tile, l_tile), 1)
        for k in range(1, k_size):
            # rolled[l] = x0[(l + k) % l_tile]; wrapped lanes get fixed below.
            tap = pltpu.roll(x0, shift=l_tile - k, axis=1)
            for i in range(k):                                  # k - 1 <= 2 selects
                tap = jnp.where(lane == (l_tile - k + i), halo[:, i:i + 1], tap)
            taps.append(tap)
    _fma_relu_store(taps, w, o_ref)


def _encoder_kernel_taps(*refs, k_size):
    """stride > 1: wrapper already deinterleaved x into K unit-stride taps."""
    tap_refs = refs[:k_size]
    w_ref, o_ref = refs[k_size], refs[k_size + 1]
    w = w_ref[...].astype(jnp.float32)
    taps = [r[...].astype(jnp.float32) for r in tap_refs]
    _fma_relu_store(taps, w, o_ref)


# ----------------------------------------------------------------------------
# Wrapper
# ----------------------------------------------------------------------------
def _round_up(v, m):
    return ((int(v) + m - 1) // m) * m


def _vmem_capacity_bytes():
    """Physical per-core VMEM; falls back to the smallest generation (v7x, 64 MiB)."""
    try:
        cap = getattr(pltpu.get_tpu_info(), "vmem_capacity_bytes", None)
        if cap:
            return int(cap)
    except Exception:
        pass
    return 64 << 20


def _vmem_block_bytes(shape, itemsize=4):
    """Conservative VMEM footprint of one block (last two dims padded to (8,128))."""
    dims = list(shape)
    dims[-1] = _round_up(dims[-1], 128)
    if len(dims) >= 2:
        dims[-2] = _round_up(dims[-2], 8)
    n = 1
    for d in dims:
        n *= int(d)
    return n * itemsize


def encoder_forward(x, weight, *, kernel_dim, l_tile=None):
    """Encoder.forward: ReLU(Conv1d(1, F, K, stride=K//2, bias=False)(x[:, None])).

    x      : [B, T]        float32
    weight : [F, 1, K]     (PyTorch Conv1d weight layout)
    returns: [B, F, L_out] with L_out = (T - K) // (K // 2) + 1
    """
    if x.ndim != 2:
        raise ValueError(f"expected [B, T] input, got {x.shape}")
    B, T = x.shape
    F = weight.shape[0]
    K = int(kernel_dim)
    if K < 2:
        raise ValueError("kernel_dim must be >= 2 (stride = kernel_dim // 2 > 0)")
    stride = K // 2
    L_out = (T - K) // stride + 1
    if L_out < 1:
        raise ValueError("input too short for this kernel_dim")
    out_dtype = x.dtype
    itemsize = jnp.dtype(out_dtype).itemsize
    w = weight[:, 0, :]                                        # (F, K)

    # ---- batch tiling -------------------------------------------------------
    if B <= 16:
        b_tile = B                                             # full-dim block
    elif B % 16 == 0:
        b_tile = 16
    elif B % 8 == 0:
        b_tile = 8
    else:
        b_tile = B                                             # avoid partial sublane blocks
    n_b = int(pl.cdiv(B, b_tile))

    # ---- per-generation VMEM budget ----------------------------------------
    vmem_cap = _vmem_capacity_bytes()                          # 64 MiB (v7x) / 128 MiB (v5e/v6e)
    budget = vmem_cap // 2                                     # 32 MiB / 64 MiB

    # ---- L tiling: ~4-8 MiB output blocks, lane aligned ---------------------
    L_al = _round_up(L_out, 128)
    if l_tile is None:
        target_out_blk = min(8 << 20, max(2 << 20, budget // 6))
        l_tile = (target_out_blk // (b_tile * F * itemsize)) // 128 * 128
        l_tile = int(max(128, min(l_tile, 8192, L_al)))
        # v7x megacore balance: if the batch axis has only one tile, split L so
        # both TensorCores get work (only when each half is still >= 512 lanes).
        if n_b == 1 and L_al >= 1024:
            half = _round_up(pl.cdiv(L_al, 2), 128)
            l_tile = min(l_tile, half)
    else:
        if l_tile % 128 != 0:
            raise ValueError("l_tile must be a multiple of 128")
        l_tile = int(min(l_tile, L_al))

    def _est_vmem(lt):
        if stride == 1:
            ins = (_vmem_block_bytes((b_tile, lt))             # current window
                   + _vmem_block_bytes((b_tile, 128))          # 128-lane halo
                   + _vmem_block_bytes((F, K)))                # weights
        else:
            ins = K * _vmem_block_bytes((b_tile, lt)) + _vmem_block_bytes((F, K))
        outb = _vmem_block_bytes((b_tile, F, lt))
        # 2x: double-buffered pipeline blocks; +3x outb: f32 accumulator / tap temps.
        return 2 * (ins + outb) + 3 * outb + (2 << 20)

    while _est_vmem(l_tile) > budget and l_tile > 128:
        l_tile = max(128, ((l_tile // 2) // 128) * 128)

    n_l = int(pl.cdiv(L_out, l_tile))
    # Pad the output L dim only when it is a single tiny tile (cheap slice);
    # for large outputs the masked tail store is cheaper than a full copy.
    out_L = L_out if L_out >= 128 else l_tile

    # ---- operands & specs ---------------------------------------------------
    if stride == 1:
        # x block j covers x[:, j*l_tile : (j+1)*l_tile]; the K-1 halo samples
        # come from a 128-wide block starting at (j+1)*l_tile.
        T_pad = n_l * l_tile + 128
        x_p = jnp.pad(x, ((0, 0), (0, T_pad - T))) if T_pad > T else x
        blocks_per_tile = l_tile // 128
        in_specs = [
            pl.BlockSpec((b_tile, l_tile), lambda i, j: (i, j)),
            pl.BlockSpec((b_tile, 128),
                         lambda i, j: (i, (j + 1) * blocks_per_tile)),
            pl.BlockSpec((F, K), lambda i, j: (0, 0)),
        ]
        operands = (x_p, x_p, w)
        kernel = functools.partial(_encoder_kernel_stride1, k_size=K)
        in_bytes = (x_p.size + n_b * n_l * b_tile * 128 + w.size) * itemsize
    else:
        # Deinterleave in the wrapper: tap_k[:, l] = x[:, l*stride + k].
        # All in-kernel loads are then unit-stride, lane-aligned full blocks.
        L_cols = n_l * l_tile
        T_need = (L_cols - 1) * stride + K
        x_p = jnp.pad(x, ((0, 0), (0, max(0, T_need - T)))) if T_need > T else x
        taps = tuple(
            jax.lax.slice(x_p, (0, k), (B, k + (L_cols - 1) * stride + 1), (1, stride))
            for k in range(K))
        in_specs = [pl.BlockSpec((b_tile, l_tile), lambda i, j: (i, j))
                    for _ in range(K)]
        in_specs.append(pl.BlockSpec((F, K), lambda i, j: (0, 0)))
        operands = (*taps, w)
        kernel = functools.partial(_encoder_kernel_taps, k_size=K)
        in_bytes = (sum(int(t.size) for t in taps) + int(w.size)) * itemsize
        # TODO(synk): for very large kernel_dim an MXU contraction could pay off;
        # for this module's tiny K the exact-f32 VPU FMA path is the right regime.

    out_specs = pl.BlockSpec((b_tile, F, l_tile), lambda i, j: (i, 0, j))

    cost = pl.CostEstimate(
        flops=2 * B * F * out_L * K,
        transcendentals=0,
        bytes_accessed=int(in_bytes + B * F * out_L * itemsize),
    )

    out = pl.pallas_call(
        kernel,
        out_shape=jax.ShapeDtypeStruct((B, F, out_L), out_dtype),
        grid_spec=pltpu.PrefetchScalarGridSpec(
            num_scalar_prefetch=0,
            grid=(n_b, n_l),
            in_specs=in_specs,
            out_specs=out_specs,
        ),
        compiler_params=pltpu.CompilerParams(
            dimension_semantics=("parallel", "parallel"),
            vmem_limit_bytes=int(budget),
        ),
        cost_estimate=cost,
    )(*operands)

    if out_L != L_out:
        out = out[:, :, :L_out]
    return out


# ----------------------------------------------------------------------------
# Pure-JAX reference (same math as PyTorch Conv1d(1,F,K,stride=K//2) + ReLU)
# ----------------------------------------------------------------------------
def reference_forward(x, weight, *, kernel_dim):
    K = int(kernel_dim)
    stride = K // 2
    B, T = x.shape
    L_out = (T - K) // stride + 1
    idx = jnp.arange(L_out)[:, None] * stride + jnp.arange(K)[None, :]
    frames = x[:, idx]                                         # (B, L_out, K)
    w = weight[:, 0, :]                                        # (F, K)
    out = jnp.sum(frames[:, None, :, :] * w[None, :, None, :], axis=-1)
    return jnp.maximum(out, 0.0)                               # (B, F, L_out)


if __name__ == "__main__":
    key = jax.random.PRNGKey(0)
    kx, kw, kx2, kw4, kx3, kx4 = jax.random.split(key, 6)

    feature_dim = 32

    # ---- Test 1: module defaults (kernel_dim=2 -> stride=1), tiny shapes ----
    B, T, K = 2, 16, 2
    bound = 1.0 / (1 * K) ** 0.5
    x = jax.random.normal(kx, (B, T), dtype=jnp.float32)
    w = jax.random.uniform(kw, (feature_dim, 1, K), dtype=jnp.float32,
                           minval=-bound, maxval=bound)
    out = jax.block_until_ready(encoder_forward(x, w, kernel_dim=K))
    ref = reference_forward(x, w, kernel_dim=K)
    L_out = (T - K) // (K // 2) + 1
    assert out.shape == (B, feature_dim, L_out), out.shape
    assert jnp.allclose(out, ref, atol=1e-5, rtol=1e-5), "test1 mismatch vs reference"

    # ---- Test 2: multi L-tile path (grid (1,3)), roll/halo across tiles,
    #              partial (masked) final output tile --------------------------
    T2 = 300
    x2 = jax.random.normal(kx2, (B, T2), dtype=jnp.float32)
    out2 = jax.block_until_ready(encoder_forward(x2, w, kernel_dim=K, l_tile=128))
    ref2 = reference_forward(x2, w, kernel_dim=K)
    assert out2.shape == ref2.shape, out2.shape
    assert jnp.allclose(out2, ref2, atol=1e-5, rtol=1e-5), "test2 mismatch vs reference"

    # ---- Test 3: kernel_dim=4 (stride 2) -> wrapper-deinterleaved tap path ---
    K4 = 4
    bound4 = 1.0 / (1 * K4) ** 0.5
    w4 = jax.random.uniform(kw4, (feature_dim, 1, K4), dtype=jnp.float32,
                            minval=-bound4, maxval=bound4)
    T3 = 64
    x3 = jax.random.normal(kx3, (B, T3), dtype=jnp.float32)
    out3 = jax.block_until_ready(encoder_forward(x3, w4, kernel_dim=K4))
    ref3 = reference_forward(x3, w4, kernel_dim=K4)
    assert out3.shape == ref3.shape, out3.shape
    assert jnp.allclose(out3, ref3, atol=1e-5, rtol=1e-5), "test3 mismatch vs reference"

    # ---- Test 4: multiple batch tiles (B=32 -> b_tile=16, n_b=2) + L tiling --
    B4, T4 = 32, 300
    x4 = jax.random.normal(kx4, (B4, T4), dtype=jnp.float32)
    out4 = jax.block_until_ready(encoder_forward(x4, w, kernel_dim=K, l_tile=128))
    ref4 = reference_forward(x4, w, kernel_dim=K)
    assert out4.shape == ref4.shape, out4.shape
    assert jnp.allclose(out4, ref4, atol=1e-5, rtol=1e-5), "test4 mismatch vs reference"

    print("KERNEL_OK")
</pallas_src>

<mosaic_0001>
module attributes {stable_mosaic.version = 11 : i64} {
  func.func @_encoder_kernel_stride1(%arg0: i32, %arg1: i32, %arg2: memref<2x128xf32, #tpu.memory_space<vmem>>, %arg3: memref<2x128xf32, #tpu.memory_space<vmem>>, %arg4: memref<32x2xf32, #tpu.memory_space<vmem>>, %arg5: memref<2x32x128xf32, #tpu.memory_space<vmem>>) attributes {dimension_semantics = [#tpu.dimension_semantics<parallel>, #tpu.dimension_semantics<parallel>], iteration_bounds = array<i64: 1, 1>, scalar_prefetch = 0 : i64, scratch_operands = 0 : i64, tpu.core_type = #tpu.core_type<tc>, window_params = [{transform_indices = @transform_0, window_bounds = array<i64: 2, 128>}, {transform_indices = @transform_1, window_bounds = array<i64: 2, 128>}, {pipeline_mode = #tpu.pipeline_mode<synchronous>, transform_indices = @transform_2, window_bounds = array<i64: 32, 2>}, {transform_indices = @transform_3, window_bounds = array<i64: 2, 32, 128>}]} {
    %c0 = arith.constant 0 : index
    %c0_0 = arith.constant 0 : index
    %0 = vector.load %arg4[%c0, %c0_0] : memref<32x2xf32, #tpu.memory_space<vmem>>, vector<32x2xf32>
    %c0_1 = arith.constant 0 : index
    %c0_2 = arith.constant 0 : index
    %1 = vector.load %arg2[%c0_1, %c0_2] : memref<2x128xf32, #tpu.memory_space<vmem>>, vector<2x128xf32>
    %c0_3 = arith.constant 0 : index
    %c0_4 = arith.constant 0 : index
    %2 = vector.load %arg3[%c0_3, %c0_4] : memref<2x128xf32, #tpu.memory_space<vmem>>, vector<2x128xf32>
    %3 = tpu.iota {dimensions = array<i32: 1>} : vector<2x128xi32>
    %c127_i32 = arith.constant 127 : i32
    %4 = tpu.dynamic_rotate %1 by %c127_i32 dim 1 : vector<2x128xf32>, i32 -> vector<2x128xf32>
    %c127_i32_5 = arith.constant 127 : i32
    %5 = vector.broadcast %c127_i32_5 : i32 to vector<2x128xi32>
    %6 = arith.cmpi eq, %3, %5 : vector<2x128xi32>
    %7 = vector.extract_strided_slice %2 {offsets = [0, 0], sizes = [2, 1], strides = [1, 1]} : vector<2x128xf32> to vector<2x1xf32>
    %8 = vector.shape_cast %7 : vector<2x1xf32> to vector<2x1xf32>
    %9 = vector.broadcast %8 : vector<2x1xf32> to vector<2x128xf32>
    %10 = arith.select %6, %9, %4 : vector<2x128xi1>, vector<2x128xf32>
    %11 = vector.extract_strided_slice %0 {offsets = [0, 0], sizes = [32, 1], strides = [1, 1]} : vector<32x2xf32> to vector<32x1xf32>
    %12 = vector.shape_cast %11 : vector<32x1xf32> to vector<32xf32>
    %13 = vector.shape_cast %12 : vector<32xf32> to vector<1x32x1xf32>
    %14 = vector.shape_cast %1 : vector<2x128xf32> to vector<2x1x128xf32>
    %15 = vector.broadcast %13 : vector<1x32x1xf32> to vector<2x32x128xf32>
    %16 = vector.broadcast %14 : vector<2x1x128xf32> to vector<2x32x128xf32>
    %17 = arith.mulf %15, %16 : vector<2x32x128xf32>
    %18 = vector.extract_strided_slice %0 {offsets = [0, 1], sizes = [32, 1], strides = [1, 1]} : vector<32x2xf32> to vector<32x1xf32>
    %19 = vector.shape_cast %18 : vector<32x1xf32> to vector<32xf32>
    %20 = vector.shape_cast %19 : vector<32xf32> to vector<1x32x1xf32>
    %21 = vector.shape_cast %10 : vector<2x128xf32> to vector<2x1x128xf32>
    %22 = vector.broadcast %20 : vector<1x32x1xf32> to vector<2x32x128xf32>
    %23 = vector.broadcast %21 : vector<2x1x128xf32> to vector<2x32x128xf32>
    %24 = arith.mulf %22, %23 : vector<2x32x128xf32>
    %25 = arith.addf %17, %24 : vector<2x32x128xf32>
    %cst = arith.constant 0.000000e+00 : f32
    %26 = vector.broadcast %cst : f32 to vector<2x32x128xf32>
    %27 = arith.maximumf %25, %26 : vector<2x32x128xf32>
    %c0_6 = arith.constant 0 : index
    %c0_7 = arith.constant 0 : index
    %c0_8 = arith.constant 0 : index
    %28 = vector.load %arg5[%c0_6, %c0_7, %c0_8] : memref<2x32x128xf32, #tpu.memory_space<vmem>>, vector<2x32x128xf32>
    tpu.vector_store %arg5[%c0_6, %c0_7, %c0_8], %27 {strides = array<i32>} : memref<2x32x128xf32, #tpu.memory_space<vmem>>, vector<2x32x128xf32>,
    return
  }
  func.func @transform_0(%arg0: i32, %arg1: i32) -> (i32, i32) {
    %c0_i32 = arith.constant 0 : i32
    return %arg0, %arg1 : i32, i32
  }
  func.func @transform_1(%arg0: i32, %arg1: i32) -> (i32, i32) {
    %c1_i32 = arith.constant 1 : i32
    %0 = arith.addi %arg1, %c1_i32 : i32
    %c1_i32_0 = arith.constant 1 : i32
    %1 = arith.muli %0, %c1_i32_0 : i32
    %c0_i32 = arith.constant 0 : i32
    return %arg0, %1 : i32, i32
  }
  func.func @transform_2(%arg0: i32, %arg1: i32) -> (i32, i32) {
    %c0_i32 = arith.constant 0 : i32
    %c0_i32_0 = arith.constant 0 : i32
    %c0_i32_1 = arith.constant 0 : i32
    return %c0_i32, %c0_i32_0 : i32, i32
  }
  func.func @transform_3(%arg0: i32, %arg1: i32) -> (i32, i32, i32) {
    %c0_i32 = arith.constant 0 : i32
    %c0_i32_0 = arith.constant 0 : i32
    return %arg0, %c0_i32, %arg1 : i32, i32, i32
  }
}

</mosaic_0001>

<llo_original>
// kernel: tpu_custom_call.1
$region0: #{tpu_custom_call.1}
  #allocation0 [shape = 'u32[]', space=smem, size = 0x4, offset = 0x4, fixed_abs, tag = 'smem constant byte address 0x4 - core index']
  #allocation1 [shape = 'u32[144,128]{1,0:T(1,128)}', space=vmem, size = 0x12000, scoped, tag = 'internal scratch']
  %s0 = inlined_call_operand.vmem [shape: f32[2,256], index: 0, kind: input, shape index: {}]
  %s1 = inlined_call_operand.vmem [shape: f32[2,256], index: 1, kind: input, shape index: {}]
  %s2 = inlined_call_operand.vmem [shape: f32[32,2], index: 2, kind: input, shape index: {}]
  %s3 = inlined_call_operand.hbm [shape: f32[2,32,128], index: 3, kind: output, shape index: {}]
  %s4 = sld [smem:[#allocation0]]
  $region22: #{tpu_custom_call.1} parent=0
    _
  %s6 = ssub.s32 1, %s4
  %s7 = scalar_select 0, %s6, %s4
  $region1: #{tpu_custom_call.1} parent=0
    #allocation2 [shape = 'u8[32768]{0}', space=vmem, size = 0x8000, scoped, tag = 'output window, operand 0, single buffered']
    #allocation3 [shape = 's32[1]{0}', space=sflag, size = 0x4, scoped, tag = 'scoped memory for tpu_custom_call.1']
    %8 = vsyncpa [#allocation3], 0
    // Predicated region
    $region2: #{tpu_custom_call.1} parent=1 // pred_check
      _
    $region3: #{tpu_custom_call.1} parent=1 // pred_check_branch
      %10 = sbr.rel (0) target = $region5
    $region4: #{tpu_custom_call.1} parent=1 // pred_region
      _
    $region5: #{tpu_custom_call.1} parent=1 // pred_fallthru
      _
    // Predicated region
    $region6: #{tpu_custom_call.1} parent=1 // pred_check
      _
    $region7: #{tpu_custom_call.1} parent=1 // pred_check_branch
      %12 = sbr.rel (0) target = $region9
    $region8: #{tpu_custom_call.1} parent=1 // pred_region
      %s13 = sadd.s32 0, 1
      %p14 = scmp.lt.s32.totalorder %s13, 1
      %s15 = scalar_select %p14, %s13, 1
      %s16 = smul.addr %s15, 2
      %s17 = scalar_lea.vmem %s1, %s16
      %s18 = sadd.s32 0, 1
    $region9: #{tpu_custom_call.1} parent=1 // pred_fallthru
      _
    // Predicated region
    $region10: #{tpu_custom_call.1} parent=1 // pred_check
      _
    $region11: #{tpu_custom_call.1} parent=1 // pred_check_branch
      %20 = sbr.rel (0) target = $region13
    $region12: #{tpu_custom_call.1} parent=1 // pred_region
      _
    $region13: #{tpu_custom_call.1} parent=1 // pred_fallthru
      _
    %s21 = sadd.s32 0, 1
    %p22 = scmp.lt.s32.totalorder %s21, 1
    %s23 = scalar_select %p22, %s21, 1
    %s24 = smul.addr %s23, 2
    %s25 = scalar_lea.vmem %s1, %s24
    %s26 = sadd.s32 0, 1
    %p27 = scmp.lt.s32.totalorder %s26, 1
    %s28 = scalar_select %p27, %s26, 1
    %s29 = smul.addr %s28, 2
    %s30 = scalar_lea.vmem %s1, %s29
    %s31 = sadd.s32 0, 1
    %v32 = vld [vmem:[%s2] sm:$0xff]
    %v33 = vld [vmem:[%s2 + $0x8] sm:$0xff]
    %v34 = vld [vmem:[%s2 + $0x10] sm:$0xff]
    %v35 = vld [vmem:[%s2 + $0x18] sm:$0xff]
    %v36 = vld [vmem:[%s0] sm:$0x3]
    %v37 = vld [vmem:[%s30] sm:$0x3]
    %v38 = vlaneseq
    %v39 = vand.u32 %v38, 127
    %40 = vrot.lane.b32.xlu0 %v36, 127
    %v41 = vpop.permute.xlu0 %40
    %vm42 = vcmp.eq.s32.totalorder %v39, 127
    %44 = vset.pattern.permute.xlu0 0
    %45 = vperm.xlu0 %44, %v37
    %v46 = vpop.permute.xlu0 %45
    %v48 = vsel %vm42, %v46, %v41
    %v51 = vunpack.c.l.s4 1966171168
    %v52 = vunpack.c.0.s8 %v51
    %v53 = vlaneseq
    %v54 = vshrl.u32 %v53, 7
    %v55 = vsub.s32 %v52, %v54
    %v56 = vrot.slane %v36, %v55
    %v57 = vcombine.high %v56, %v56
    %v59 = vunpack.c.l.s4 1966171168
    %v60 = vunpack.c.0.s8 %v59
    %v61 = vlaneseq
    %v62 = vshrl.u32 %v61, 7
    %v63 = vsub.s32 %v60, %v62
    %v64 = vrot.slane %v56, %v63
    %v66 = vunpack.c.l.s4 1966171168
    %v67 = vunpack.c.0.s8 %v66
    %v68 = vlaneseq
    %v69 = vshrl.u32 %v68, 7
    %v70 = vsub.s32 %v67, %v69
    %v71 = vrot.slane %v57, %v70
    %73 = vset.pattern.permute.xlu0 0
    %74 = vperm.xlu0 %73, %v32
    %v75 = vpop.permute.xlu0 %74
    %78 = vset.pattern.permute.xlu0 0
    %79 = vperm.xlu0 %78, %v33
    %v80 = vpop.permute.xlu0 %79
    %83 = vset.pattern.permute.xlu0 0
    %84 = vperm.xlu0 %83, %v34
    %v85 = vpop.permute.xlu0 %84
    %88 = vset.pattern.permute.xlu0 0
    %89 = vperm.xlu0 %88, %v35
    %v90 = vpop.permute.xlu0 %89
    %v92 = vlaneseq
    %v93 = vshrl.u32 %v92, 7
    %v94 = vsub.s32 0, %v93
    %v95 = vrot.slane %v64, %v94
    %v96 = vlaneseq
    %v97 = vshrl.u32 %v96, 7
    %v98 = vsub.s32 0, %v97
    %v99 = vrot.slane %v71, %v98
    %v102 = vmul.f32 %v75, %v95
    %v103 = vmul.f32 %v80, %v95
    %v104 = vmul.f32 %v85, %v95
    %v105 = vmul.f32 %v90, %v95
    %v106 = vmul.f32 %v75, %v99
    %v107 = vmul.f32 %v80, %v99
    %v108 = vmul.f32 %v85, %v99
    %v109 = vmul.f32 %v90, %v99
    %v112 = vunpack.c.l.s4 1966171168
    %v113 = vunpack.c.0.s8 %v112
    %v114 = vlaneseq
    %v115 = vshrl.u32 %v114, 7
    %v116 = vsub.s32 %v113, %v115
    %v117 = vrot.slane %v48, %v116
    %v118 = vcombine.high %v117, %v117
    %v120 = vunpack.c.l.s4 1966171168
    %v121 = vunpack.c.0.s8 %v120
    %v122 = vlaneseq
    %v123 = vshrl.u32 %v122, 7
    %v124 = vsub.s32 %v121, %v123
    %v125 = vrot.slane %v117, %v124
    %v127 = vunpack.c.l.s4 1966171168
    %v128 = vunpack.c.0.s8 %v127
    %v129 = vlaneseq
    %v130 = vshrl.u32 %v129, 7
    %v131 = vsub.s32 %v128, %v130
    %v132 = vrot.slane %v118, %v131
    %133 = vset.pattern.permute.xlu0 1
    %134 = vperm.xlu0 %133, %v32
    %v135 = vpop.permute.xlu0 %134
    %137 = vset.pattern.permute.xlu0 1
    %138 = vperm.xlu0 %137, %v33
    %v139 = vpop.permute.xlu0 %138
    %141 = vset.pattern.permute.xlu0 1
    %142 = vperm.xlu0 %141, %v34
    %v143 = vpop.permute.xlu0 %142
    %145 = vset.pattern.permute.xlu0 1
    %146 = vperm.xlu0 %145, %v35
    %v147 = vpop.permute.xlu0 %146
    %v149 = vlaneseq
    %v150 = vshrl.u32 %v149, 7
    %v151 = vsub.s32 0, %v150
    %v152 = vrot.slane %v125, %v151
    %v153 = vlaneseq
    %v154 = vshrl.u32 %v153, 7
    %v155 = vsub.s32 0, %v154
    %v156 = vrot.slane %v132, %v155
    %v159 = vmul.f32 %v135, %v152
    %v160 = vmul.f32 %v139, %v152
    %v161 = vmul.f32 %v143, %v152
    %v162 = vmul.f32 %v147, %v152
    %v163 = vmul.f32 %v135, %v156
    %v164 = vmul.f32 %v139, %v156
    %v165 = vmul.f32 %v143, %v156
    %v166 = vmul.f32 %v147, %v156
    %v167 = vadd.f32 %v102, %v159
    %v168 = vadd.f32 %v103, %v160
    %v169 = vadd.f32 %v104, %v161
    %v170 = vadd.f32 %v105, %v162
    %v171 = vadd.f32 %v106, %v163
    %v172 = vadd.f32 %v107, %v164
    %v173 = vadd.f32 %v108, %v165
    %v174 = vadd.f32 %v109, %v166
    %v175 = vmax.f32 %v167, 0.0
    %v176 = vmax.f32 %v168, 0.0
    %v177 = vmax.f32 %v169, 0.0
    %v178 = vmax.f32 %v170, 0.0
    %v179 = vmax.f32 %v171, 0.0
    %v180 = vmax.f32 %v172, 0.0
    %v181 = vmax.f32 %v173, 0.0
    %v182 = vmax.f32 %v174, 0.0
    %183 = vst [vmem:[#allocation2] sm:$0xff] %v175
    %184 = vst [vmem:[#allocation2 + $0x8] sm:$0xff] %v176
    %185 = vst [vmem:[#allocation2 + $0x10] sm:$0xff] %v177
    %186 = vst [vmem:[#allocation2 + $0x18] sm:$0xff] %v178
    %187 = vst [vmem:[#allocation2 + $0x20] sm:$0xff] %v179
    %188 = vst [vmem:[#allocation2 + $0x28] sm:$0xff] %v180
    %189 = vst [vmem:[#allocation2 + $0x30] sm:$0xff] %v181
    %190 = vst [vmem:[#allocation2 + $0x38] sm:$0xff] %v182
    // Predicated region
    $region14: #{tpu_custom_call.1} parent=1 // pred_check
      _
    $region15: #{tpu_custom_call.1} parent=1 // pred_check_branch
      %192 = sbr.rel (0) target = $region17
    $region16: #{tpu_custom_call.1} parent=1 // pred_region
      %s194 = ssub.s32 1024, 1024
      %195 = vsyncadd [#allocation3], %s194
      %s196 = sshll.u32 [#allocation2], 4
      %s197 = int_to_ptr.vmem [resolvable:$true] %s196
      %202 = dma.vmem_to_hbm [thread:$0]  %s197, 1024, %s3, [#allocation3], 128, 128, 8
    $region17: #{tpu_custom_call.1} parent=1 // pred_fallthru
      _
    // Predicated region
    $region18: #{tpu_custom_call.1} parent=1 // pred_check
      _
    $region19: #{tpu_custom_call.1} parent=1 // pred_check_branch
      %204 = sbr.rel (0) target = $region21
    $region20: #{tpu_custom_call.1} parent=1 // pred_region
      %205 = dma.done [#allocation3], 1024
    $region21: #{tpu_custom_call.1} parent=1 // pred_fallthru
      _
    %206 = vsyncpa [#allocation3], 1

</llo_original>
